<compile_context>
chip_gen: v5e
topology: v5e:2x2
jax: 0.10.0
libtpu: 0.0.40
codegen_flags: <defaults>
</compile_context>

<pallas_src>
import jax
import jax.numpy as jnp
from jax.experimental import pallas as pl
from jax.experimental.pallas import tpu as pltpu

_MIB = 1 << 20


def _channel_sum_kernel(x_ref, o_ref):
    # x_ref: (1, C, T) VMEM tile   o_ref: (1, 1, T)
    x = x_ref[...]
    if jnp.issubdtype(x.dtype, jnp.floating):
        acc_dtype = jnp.float32
    else:
        acc_dtype = jnp.int32
    o_ref[...] = jnp.sum(x, axis=1, keepdims=True, dtype=acc_dtype).astype(o_ref.dtype)


def _vmem_capacity_bytes():
    try:
        return int(pltpu.get_tpu_info().vmem_capacity_bytes)
    except Exception:
        return 64 * _MIB  # conservative (v7x-sized) fallback


def _pick_spatial_tile(hw, c, in_itemsize, out_itemsize, pipeline_budget, batch):
    """Lane-tile T (multiple of 128, or exactly hw) maximizing DMA size.

    Pipeline VMEM per grid step = 2*(C*T*in) + 2*(1*T*out) (double-buffered
    input + output blocks); choose T so this fits `pipeline_budget`.
    """
    per_lane = 2 * (c * in_itemsize + out_itemsize)
    t = max(128, (pipeline_budget // per_lane) // 128 * 128)

    # Megacore / pipeline balance: prefer >= ~8 total grid steps when the
    # input is large enough (v7x has two TensorCores), but never shrink the
    # input block below ~1 MiB (DMA / per-step overhead dominates below that).
    min_t = max(128, (_MIB // max(1, c * in_itemsize)) // 128 * 128)
    while t > min_t and batch * pl.cdiv(hw, t) < 8:
        t = max(min_t, ((t // 2) // 128) * 128)

    if t >= hw:
        t = hw  # single full-extent block; exact array dim is always legal
    return t


def null_discriminator_forward(x):
    """Pallas implementation of NullDiscriminator.forward (sum over channels)."""
    B, C, H, W = x.shape
    HW = H * W
    x2 = x.reshape(B, C, HW)  # lane-dense spatial axis; no padding, no copy

    if jnp.issubdtype(x.dtype, jnp.floating):
        out_dtype = x.dtype
    else:
        out_dtype = jnp.int32  # TODO(synk): int64 under x64 to match torch exactly

    in_itemsize = jnp.dtype(x.dtype).itemsize
    out_itemsize = jnp.dtype(out_dtype).itemsize

    vmem_cap = _vmem_capacity_bytes()
    pipeline_budget = max(4 * _MIB, vmem_cap // 4)
    T = _pick_spatial_tile(HW, C, in_itemsize, out_itemsize, pipeline_budget, B)
    grid = (B, pl.cdiv(HW, T))

    pipeline_bytes = 2 * (C * T * in_itemsize) + 2 * (T * out_itemsize)
    vmem_limit = int(min(vmem_cap, max(32 * _MIB, pipeline_bytes + 8 * _MIB)))

    cost = pl.CostEstimate(
        flops=B * max(C - 1, 0) * HW,
        transcendentals=0,
        bytes_accessed=B * C * HW * in_itemsize + B * HW * out_itemsize,
    )

    out = pl.pallas_call(
        _channel_sum_kernel,
        out_shape=jax.ShapeDtypeStruct((B, 1, HW), out_dtype),
        grid_spec=pltpu.PrefetchScalarGridSpec(
            num_scalar_prefetch=0,
            grid=grid,
            # C full-extent -> no accumulator; T is a multiple of 128 (or == HW)
            # so stores are lane-dense.  The last spatial block may be partial:
            # correct because the reduction is per-lane and OOB writes are masked.
            in_specs=[pl.BlockSpec((1, C, T), lambda b, s: (b, 0, s))],
            out_specs=pl.BlockSpec((1, 1, T), lambda b, s: (b, 0, s)),
        ),
        compiler_params=pltpu.CompilerParams(
            dimension_semantics=("parallel", "parallel"),
            vmem_limit_bytes=vmem_limit,
        ),
        cost_estimate=cost,
    )(x2)

    return out.reshape(B, 1, H, W)


if __name__ == "__main__":
    key = jax.random.PRNGKey(0)
    # NullDiscriminator has no parameters; just an input tensor.
    x = jax.random.normal(key, (2, 4, 16, 16), dtype=jnp.float32)

    out = null_discriminator_forward(x)
    out = jax.block_until_ready(out)

    # Cross-check against plain JAX reference (same as torch .sum(1, keepdim=True))
    ref = jnp.sum(x, axis=1, keepdims=True)
    assert out.shape == (2, 1, 16, 16), out.shape
    assert jnp.allclose(out, ref, atol=1e-6, rtol=1e-6), "mismatch vs reference"

    print("KERNEL_OK")
</pallas_src>

<mosaic_0001>
module attributes {stable_mosaic.version = 11 : i64} {
  func.func @_channel_sum_kernel(%arg0: i32, %arg1: i32, %arg2: memref<1x4x256xf32, #tpu.memory_space<vmem>>, %arg3: memref<1x1x256xf32, #tpu.memory_space<vmem>>) attributes {dimension_semantics = [#tpu.dimension_semantics<parallel>, #tpu.dimension_semantics<parallel>], iteration_bounds = array<i64: 2, 1>, scalar_prefetch = 0 : i64, scratch_operands = 0 : i64, tpu.core_type = #tpu.core_type<tc>, window_params = [{transform_indices = @transform_0, window_bounds = array<i64: 1, 4, 256>}, {transform_indices = @transform_1, window_bounds = array<i64: 1, 1, 256>}]} {
    %c0 = arith.constant 0 : index
    %c0_0 = arith.constant 0 : index
    %c0_1 = arith.constant 0 : index
    %0 = vector.load %arg2[%c0, %c0_0, %c0_1] : memref<1x4x256xf32, #tpu.memory_space<vmem>>, vector<1x4x256xf32>
    %cst = arith.constant dense<0.000000e+00> : vector<1x256xf32>
    %1 = vector.multi_reduction <add>, %0, %cst [1] : vector<1x4x256xf32> to vector<1x256xf32>
    %2 = vector.shape_cast %1 : vector<1x256xf32> to vector<1x1x256xf32>
    %c0_2 = arith.constant 0 : index
    %c0_3 = arith.constant 0 : index
    %c0_4 = arith.constant 0 : index
    %3 = vector.load %arg3[%c0_2, %c0_3, %c0_4] : memref<1x1x256xf32, #tpu.memory_space<vmem>>, vector<1x1x256xf32>
    tpu.vector_store %arg3[%c0_2, %c0_3, %c0_4], %2 {strides = array<i32>} : memref<1x1x256xf32, #tpu.memory_space<vmem>>, vector<1x1x256xf32>,
    return
  }
  func.func @transform_0(%arg0: i32, %arg1: i32) -> (i32, i32, i32) {
    %c0_i32 = arith.constant 0 : i32
    %c0_i32_0 = arith.constant 0 : i32
    return %arg0, %c0_i32, %arg1 : i32, i32, i32
  }
  func.func @transform_1(%arg0: i32, %arg1: i32) -> (i32, i32, i32) {
    %c0_i32 = arith.constant 0 : i32
    %c0_i32_0 = arith.constant 0 : i32
    return %arg0, %c0_i32, %arg1 : i32, i32, i32
  }
}

</mosaic_0001>

<llo_original>
// kernel: tpu_custom_call.1
$region0: #{tpu_custom_call.1}
  #allocation0 [shape = 'u32[]', space=smem, size = 0x4, offset = 0x4, fixed_abs, tag = 'smem constant byte address 0x4 - core index']
  #allocation1 [shape = 'u32[72,128]{1,0:T(1,128)}', space=vmem, size = 0x9000, scoped, tag = 'internal scratch']
  %s0 = inlined_call_operand.hbm [shape: f32[2,4,256], index: 0, kind: input, shape index: {}]
  %s1 = inlined_call_operand.hbm [shape: f32[2,1,256], index: 1, kind: output, shape index: {}]
  %s2 = sld [smem:[#allocation0]]
  $region41: #{tpu_custom_call.1} parent=0
    _
  %s4 = ssub.s32 1, %s2
  %s5 = scalar_select 0, %s4, %s2
  $region1: #{tpu_custom_call.1} parent=0
    #allocation2 [shape = 'u8[8192]{0}', space=vmem, size = 0x2000, scoped, tag = 'input window, operand 0']
    #allocation3 [shape = 's32[2]{0}', space=sflag, size = 0x8, scoped, tag = 'scoped memory for tpu_custom_call.1']
    #allocation4 [shape = 's32[2]{0}', space=sflag, size = 0x8, scoped, tag = 'scoped memory for tpu_custom_call.1']
    #allocation5 [shape = 'u8[2048]{0}', space=vmem, size = 0x800, scoped, tag = 'output window, operand 0']
    %6 = vsyncpa [#allocation3], 0
    %s7 = scalar_lea.sflag [#allocation3], 1
    %8 = vsyncpa %s7, 0
    %9 = vsyncpa [#allocation4], 0
    %s10 = scalar_lea.sflag [#allocation4], 1
    %11 = vsyncpa %s10, 0
    loop: start=0, step=1, limit=4
    $region2: #{tpu_custom_call.1} parent=1 // loop_pre_header
      _
    $region3: #{tpu_custom_call.1} parent=1 // loop_header
      %s13 = sphi 0, %s17
      %p14 = scmp.ge.s32.totalorder %s13, 4
      %s20 = sphi 0, %s32
      %s21 = sphi 0, %s28
      %s22 = sphi 0, %s20
      %s23 = sphi 0, %s21
      %s24 = sphi 0, %s22
      %s25 = sphi 0, %s23
      %s37 = sphi 0, %s39
      %s40 = sphi 0, %s37
      %s41 = sphi 0, %s40
      %s57 = sphi 0, %s41
      %s65 = sphi 0, %s67
      %s68 = sphi 0, %s65
      %s69 = sphi 0, %s68
      %s85 = sphi 0, %s69
    $region4: #{tpu_custom_call.1} parent=1 // loop_header_branch
      %16 = sbr.rel (%p14) target = $region8
    $region5: #{tpu_custom_call.1} parent=1 // loop_body
      %s18 = ssub.s32 %s13, 1
      %s19 = ssub.s32 %s13, 2
      %s26 = sadd.s32 1, %s21
      %p27 = scmp.ge.s32.totalorder %s26, 1
      %s28 = scalar_select %p27, 0, %s26
      %s29 = sadd.s32 1, %s20
      %s30 = scalar_select %p27, %s29, %s20
      %p31 = scmp.ge.s32.totalorder %s30, 2
      %s32 = scalar_select %p31, 0, %s30
      %s33 = ssub.s32 %s20, %s32
      %s34 = ssub.s32 %s21, %s28
      %s35 = sor.u32 %s33, %s34
      %p36 = scmp.eq.s32.totalorder %s35, 0
      %s38 = sadd.s32 %s37, 1
      %s39 = scalar_select %p36, %s37, %s38
      %p42 = pneg %p36
      %p43 = scmp.eq.s32.totalorder %s13, 1
      %p44 = por %p42, %p43
      %p45 = scmp.ne.s32.totalorder %s37, %s40
      %p46 = scmp.eq.s32.totalorder %s13, 0
      %p47 = por %p45, %p46
      %p48 = scmp.ne.s32.totalorder %s37, %s40
      %p49 = scmp.eq.s32.totalorder %s18, 1
      %p50 = por %p48, %p49
      %p51 = scmp.ne.s32.totalorder %s40, %s41
      %p52 = scmp.eq.s32.totalorder %s18, 0
      %p53 = por %p51, %p52
      %p54 = scmp.ne.s32.totalorder %s40, %s41
      %p55 = scmp.eq.s32.totalorder %s19, 1
      %p56 = por %p54, %p55
      %p58 = scmp.ne.s32.totalorder %s41, %s57
      %p59 = scmp.eq.s32.totalorder %s19, 0
      %p60 = por %p58, %p59
      %s61 = ssub.s32 %s20, %s32
      %s62 = ssub.s32 %s21, %s28
      %s63 = sor.u32 %s61, %s62
      %p64 = scmp.eq.s32.totalorder %s63, 0
      %s66 = sadd.s32 %s65, 1
      %s67 = scalar_select %p64, %s65, %s66
      %p70 = pneg %p64
      %p71 = scmp.eq.s32.totalorder %s13, 1
      %p72 = por %p70, %p71
      %p73 = scmp.ne.s32.totalorder %s65, %s68
      %p74 = scmp.eq.s32.totalorder %s13, 0
      %p75 = por %p73, %p74
      %p76 = scmp.ne.s32.totalorder %s65, %s68
      %p77 = scmp.eq.s32.totalorder %s18, 1
      %p78 = por %p76, %p77
      %p79 = scmp.ne.s32.totalorder %s68, %s69
      %p80 = scmp.eq.s32.totalorder %s18, 0
      %p81 = por %p79, %p80
      %p82 = scmp.ne.s32.totalorder %s68, %s69
      %p83 = scmp.eq.s32.totalorder %s19, 1
      %p84 = por %p82, %p83
      %p86 = scmp.ne.s32.totalorder %s69, %s85
      %p87 = scmp.eq.s32.totalorder %s19, 0
      %p88 = por %p86, %p87
      %p89 = scmp.le.s32.totalorder 1, %s13
      %p90 = scmp.lt.s32.totalorder %s13, 3
      %p91 = pnand %p89, %p90
      %p92 = pneg %p91
      // Predicated region
      $region9: #{tpu_custom_call.1} parent=5 // pred_check
        _
      $region10: #{tpu_custom_call.1} parent=5 // pred_check_branch
        %94 = sbr.rel (%p91) target = $region12
      $region11: #{tpu_custom_call.1} parent=5 // pred_region
        %s95 = ssub.s32 %s13, 1
      $region12: #{tpu_custom_call.1} parent=5 // pred_fallthru
        _
      %p96 = scmp.lt.s32.totalorder %s13, 2
      // Predicated region
      $region13: #{tpu_custom_call.1} parent=5 // pred_check
        %p97 = pneg %p96
      $region14: #{tpu_custom_call.1} parent=5 // pred_check_branch
        %99 = sbr.rel (%p97) target = $region16
      $region15: #{tpu_custom_call.1} parent=5 // pred_region
        // Predicated region
        $region17: #{tpu_custom_call.1} parent=15 // pred_check
          %p100 = pneg %p47
        $region18: #{tpu_custom_call.1} parent=15 // pred_check_branch
          %102 = sbr.rel (%p100) target = $region20
        $region19: #{tpu_custom_call.1} parent=15 // pred_region
          %s103 = sand.u32 %s37, 1
          %s104 = scalar_lea.sflag [#allocation3], %s103
          %s105 = sand.u32 %s37, 1
          %s106 = smul.addr %s105, 8
          %s107 = scalar_lea.vmem [#allocation2], %s106
          %s108 = smul.u32 2, %s21
          %110 = vsyncadd %s104, 0
          %s111 = smul.addr %s20, 2
          %s112 = sadd.s32 %s108, %s111
          %s113 = smul.addr %s112, 4
          %s114 = scalar_lea.hbm %s0, %s113
          %s116 = sshll.u32 %s114, 4
          %s117 = int_to_ptr.hbm [resolvable:$true] %s116
          %s118 = sshll.u32 %s107, 4
          %s119 = int_to_ptr.vmem [resolvable:$true] %s118
          %121 = dma.hbm_to_vmem [thread:$0]  %s117, 128, %s119, %s104
        $region20: #{tpu_custom_call.1} parent=15 // pred_fallthru
          _
      $region16: #{tpu_custom_call.1} parent=5 // pred_fallthru
        _
      %p122 = scmp.le.s32.totalorder 1, %s13
      %p123 = scmp.lt.s32.totalorder %s13, 3
      %p124 = pnand %p122, %p123
      %p125 = pneg %p124
      // Predicated region
      $region21: #{tpu_custom_call.1} parent=5 // pred_check
        _
      $region22: #{tpu_custom_call.1} parent=5 // pred_check_branch
        %127 = sbr.rel (%p124) target = $region24
      $region23: #{tpu_custom_call.1} parent=5 // pred_region
        %s128 = ssub.s32 %s13, 1
        %s129 = sand.u32 %s40, 1
        %s130 = scalar_lea.sflag [#allocation3], %s129
        %s131 = sand.u32 %s40, 1
        %s132 = smul.addr %s131, 8
        %s133 = scalar_lea.vmem [#allocation2], %s132
        // Predicated region
        $region25: #{tpu_custom_call.1} parent=23 // pred_check
          %p134 = pneg %p53
        $region26: #{tpu_custom_call.1} parent=23 // pred_check_branch
          %136 = sbr.rel (%p134) target = $region28
        $region27: #{tpu_custom_call.1} parent=23 // pred_region
          %138 = dma.done %s130, 128
        $region28: #{tpu_custom_call.1} parent=23 // pred_fallthru
          _
        %s139 = sand.u32 %s40, 1
        %s140 = scalar_lea.sflag [#allocation3], %s139
        %s141 = sand.u32 %s40, 1
        %s142 = smul.addr %s141, 8
        %s143 = scalar_lea.vmem [#allocation2], %s142
        %p144 = pneg %p53
        %p145 = pneg %p50
        %p146 = pneg %p81
        %p147 = pneg %p78
        %s148 = sand.u32 %s68, 1
        %s149 = scalar_lea.sflag [#allocation4], %s148
        %s150 = sand.u32 %s68, 1
        %s151 = smul.addr %s150, 2
        %s152 = scalar_lea.vmem [#allocation5], %s151
        %s153 = smul.u32 2, %s23
        %s154 = smul.u32 2, %s23
        %v155 = vld [vmem:[%s133] sm:$0xff]
        %157 = vst [vmem:[#allocation1] ss:$2 sm:$0xff] %v155
        %v158 = vld.sshfl [vmem:[#allocation1] sm:$0xff pattern:$0x75316420]
        %v159 = vld.sshfl [vmem:[#allocation1 + $0x8] sm:$0xff pattern:$0x75316420]
        %vm162 = vcmask 1043456
        %v163 = vsel %vm162, %v158, 0.0
        %v164 = vrot.slane %v163, 4
        %v165 = vadd.f32 %v163, %v164
        %v166 = vrot.slane %v165, 2
        %v167 = vadd.f32 %v165, %v166
        %v168 = vrot.slane %v167, 1
        %v169 = vadd.f32 %v167, %v168
        %v170 = vsel %vm162, %v159, 0.0
        %v171 = vrot.slane %v170, 4
        %v172 = vadd.f32 %v170, %v171
        %v173 = vrot.slane %v172, 2
        %v174 = vadd.f32 %v172, %v173
        %v175 = vrot.slane %v174, 1
        %v176 = vadd.f32 %v174, %v175
        %v179 = vrot.slane %v176, 7
        %vm180 = vcmask 1040384
        %v181 = vsel %vm180, %v169, %v179
        %v183 = vlaneseq
        %vm184 = vcmp.ge.s32.totalorder %v183, 0
        %vm185 = vcmp.lt.s32.totalorder %v183, 256
        %vm186 = vmand %vm184, %vm185
        %187 = vst.msk [vmem:[%s152] sm:$0x3] %vm186, %v181
        %s188 = sand.u32 %s68, 1
        %s189 = scalar_lea.sflag [#allocation4], %s188
        %s190 = sand.u32 %s68, 1
        %s191 = smul.addr %s190, 2
        %s192 = scalar_lea.vmem [#allocation5], %s191
        // Predicated region
        $region29: #{tpu_custom_call.1} parent=23 // pred_check
          %p193 = pneg %p78
        $region30: #{tpu_custom_call.1} parent=23 // pred_check_branch
          %195 = sbr.rel (%p193) target = $region32
        $region31: #{tpu_custom_call.1} parent=23 // pred_region
          %s196 = smul.u32 2, %s23
          %198 = vsyncadd %s189, 0
          %s199 = smul.addr %s22, 2
          %s200 = sadd.s32 %s196, %s199
          %s201 = scalar_lea.hbm %s1, %s200
          %s203 = sshll.u32 %s192, 4
          %s204 = int_to_ptr.vmem [resolvable:$true] %s203
          %s205 = sshll.u32 %s201, 4
          %s206 = int_to_ptr.hbm [resolvable:$true] %s205
          %208 = dma.vmem_to_hbm [thread:$0]  %s204, 32, %s206, %s189
        $region32: #{tpu_custom_call.1} parent=23 // pred_fallthru
          _
      $region24: #{tpu_custom_call.1} parent=5 // pred_fallthru
        _
      %p209 = scmp.le.s32.totalorder 2, %s13
      // Predicated region
      $region33: #{tpu_custom_call.1} parent=5 // pred_check
        %p210 = pneg %p209
      $region34: #{tpu_custom_call.1} parent=5 // pred_check_branch
        %212 = sbr.rel (%p210) target = $region36
      $region35: #{tpu_custom_call.1} parent=5 // pred_region
        %s213 = ssub.s32 %s13, 2
        // Predicated region
        $region37: #{tpu_custom_call.1} parent=35 // pred_check
          %p214 = pneg %p84
        $region38: #{tpu_custom_call.1} parent=35 // pred_check_branch
          %216 = sbr.rel (%p214) target = $region40
        $region39: #{tpu_custom_call.1} parent=35 // pred_region
          %s217 = sand.u32 %s69, 1
          %s218 = scalar_lea.sflag [#allocation4], %s217
          %s219 = sand.u32 %s69, 1
          %s220 = smul.addr %s219, 2
          %s221 = scalar_lea.vmem [#allocation5], %s220
          %223 = dma.done %s218, 32
        $region40: #{tpu_custom_call.1} parent=35 // pred_fallthru
          _
      $region36: #{tpu_custom_call.1} parent=5 // pred_fallthru
        _
    $region6: #{tpu_custom_call.1} parent=1 // loop_footer
      %s17 = sadd.s32 1, %s13
    $region7: #{tpu_custom_call.1} parent=1 // loop_footer_branch
      %12 = sbr.rel target = $region3
    $region8: #{tpu_custom_call.1} parent=1 // loop_exit
      _
    %224 = vsyncpa [#allocation3], 1
    %s225 = scalar_lea.sflag [#allocation3], 1
    %226 = vsyncpa %s225, 1
    %227 = vsyncpa [#allocation4], 1
    %s228 = scalar_lea.sflag [#allocation4], 1
    %229 = vsyncpa %s228, 1

</llo_original>
